<compile_context>
chip_gen: v6e
topology: v6e:2x2x1
jax: 0.10.0
libtpu: 0.0.40
codegen_flags: <defaults>
</compile_context>

<pallas_src>
import jax
import jax.numpy as jnp
import numpy as np
from jax.experimental import pallas as pl
from jax.experimental.pallas import tpu as pltpu


def _rotary_kernel(pos_ref, inv_ref, cos_ref, sin_ref):
    # pos_ref: (TR, k) int32    -- k consecutive position ids per packed output row
    # inv_ref: (1, dim) float32 -- [inv_freq, inv_freq] (cat duplication pre-folded)
    # cos_ref / sin_ref: (TR, k*dim) bfloat16 -- lane-dense output tiles
    pos = pos_ref[...].astype(jnp.float32)          # exact int32 -> f32 positions
    inv = inv_ref[...]                              # (1, dim) f32
    k = pos.shape[-1]
    if k == 1:
        angles = pos * inv                          # (TR, dim)
    else:
        # Build the full 128-lane angle tile once -> one dense store per output.
        angles = jnp.concatenate(
            [pos[:, i:i + 1] * inv for i in range(k)], axis=-1)   # (TR, k*dim)
    cos_ref[...] = jnp.cos(angles).astype(cos_ref.dtype)
    sin_ref[...] = jnp.sin(angles).astype(sin_ref.dtype)


class RotaryEmbeddingPallas:
    def __init__(self, dim: int, base: float = 10000.0, scaling_factor: float = 1.0):
        assert dim % 2 == 0, "rotary dim must be even"
        self.dim = dim
        self.base = base
        self.scaling_factor = scaling_factor  # unused in forward (matches PyTorch)
        # inv_freq buffer built exactly like the torch module (bf16 math).
        self.inv_freq = (
            1.0 / (base ** (jnp.arange(0, dim, 2, dtype=jnp.bfloat16) / dim))
        ).astype(jnp.bfloat16)                                     # (dim//2,)
        # f32 duplicated row used in-kernel: cat(inv_freq, inv_freq), shape (1, dim).
        self._inv_emb_row = jnp.concatenate(
            [self.inv_freq, self.inv_freq]
        ).astype(jnp.float32).reshape(1, dim)

    def __call__(self, position_ids):
        B, S = position_ids.shape
        dim = self.dim

        # Lane packing: fold k consecutive positions into one 128-lane output row.
        # (S % k == 0 guarantees packed groups never span batch boundaries.)
        if dim < 128 and 128 % dim == 0 and S % (128 // dim) == 0:
            k = 128 // dim
        else:
            k = 1                                   # dim >= 128 is already lane-dense
        R = (B * S) // k                            # packed rows (batch folded in)

        # Row tiling: largest multiple-of-8 divisor of R up to 2048; else full R.
        tr = next((t for t in (2048, 1024, 512, 256, 128, 64, 32, 16, 8)
                   if R % t == 0), R)
        n_tiles = R // tr

        pos_packed = position_ids.astype(jnp.int32).reshape(R, k)
        out_struct = jax.ShapeDtypeStruct((R, k * dim), jnp.bfloat16)

        grid_spec = pltpu.PrefetchScalarGridSpec(
            num_scalar_prefetch=0,
            grid=(n_tiles,),
            in_specs=[
                pl.BlockSpec((tr, k), lambda i: (i, 0)),
                pl.BlockSpec((1, dim), lambda i: (0, 0)),   # resident constant row
            ],
            out_specs=[
                pl.BlockSpec((tr, k * dim), lambda i: (i, 0)),
                pl.BlockSpec((tr, k * dim), lambda i: (i, 0)),
            ],
        )

        cos, sin = pl.pallas_call(
            _rotary_kernel,
            out_shape=(out_struct, out_struct),
            grid_spec=grid_spec,
            compiler_params=pltpu.CompilerParams(
                dimension_semantics=("parallel",)),
        )(pos_packed, self._inv_emb_row)

        # Free metadata reshape back to the module's (B, S, dim) layout.
        return cos.reshape(B, S, dim), sin.reshape(B, S, dim)


def _reference(position_ids, inv_freq_bf16):
    # Pure-JAX reference mirroring the kernel's math (f32 angles from the bf16
    # inv_freq buffer; positions kept exact in f32).
    inv = inv_freq_bf16.astype(jnp.float32)
    pos = position_ids.astype(jnp.float32)
    freqs = pos[..., None] * inv[None, None, :]          # (B, S, half)
    emb = jnp.concatenate([freqs, freqs], axis=-1)       # (B, S, dim)
    return (jnp.cos(emb).astype(jnp.bfloat16),
            jnp.sin(emb).astype(jnp.bfloat16))


if __name__ == "__main__":
    B, S, DIM = 2, 8, 32
    key = jax.random.PRNGKey(0)
    position_ids = jax.random.randint(key, (B, S), minval=0, maxval=4096,
                                      dtype=jnp.int32)

    rope = RotaryEmbeddingPallas(dim=DIM, base=10000.0, scaling_factor=1.0)
    cos, sin = rope(position_ids)
    jax.block_until_ready((cos, sin))

    cos_ref, sin_ref = _reference(position_ids, rope.inv_freq)
    assert cos.shape == (B, S, DIM) and sin.shape == (B, S, DIM)
    assert cos.dtype == jnp.bfloat16 and sin.dtype == jnp.bfloat16
    np.testing.assert_allclose(np.asarray(cos, dtype=np.float32),
                               np.asarray(cos_ref, dtype=np.float32), atol=2e-2)
    np.testing.assert_allclose(np.asarray(sin, dtype=np.float32),
                               np.asarray(sin_ref, dtype=np.float32), atol=2e-2)
    print("KERNEL_OK")
</pallas_src>

<mosaic_0001>
module attributes {stable_mosaic.version = 11 : i64} {
  func.func @_rotary_kernel(%arg0: i32, %arg1: memref<4x4xi32, #tpu.memory_space<vmem>>, %arg2: memref<1x32xf32, #tpu.memory_space<vmem>>, %arg3: memref<4x128xbf16, #tpu.memory_space<vmem>>, %arg4: memref<4x128xbf16, #tpu.memory_space<vmem>>) attributes {dimension_semantics = [#tpu.dimension_semantics<parallel>], iteration_bounds = array<i64: 1>, scalar_prefetch = 0 : i64, scratch_operands = 0 : i64, tpu.core_type = #tpu.core_type<tc>, window_params = [{transform_indices = @transform_0, window_bounds = array<i64: 4, 4>}, {pipeline_mode = #tpu.pipeline_mode<synchronous>, transform_indices = @transform_1, window_bounds = array<i64: 1, 32>}, {transform_indices = @transform_2, window_bounds = array<i64: 4, 128>}, {transform_indices = @transform_3, window_bounds = array<i64: 4, 128>}]} {
    %c0 = arith.constant 0 : index
    %c0_0 = arith.constant 0 : index
    %0 = vector.load %arg1[%c0, %c0_0] : memref<4x4xi32, #tpu.memory_space<vmem>>, vector<4x4xi32>
    %1 = arith.sitofp %0 : vector<4x4xi32> to vector<4x4xf32>
    %c0_1 = arith.constant 0 : index
    %c0_2 = arith.constant 0 : index
    %2 = vector.load %arg2[%c0_1, %c0_2] : memref<1x32xf32, #tpu.memory_space<vmem>>, vector<1x32xf32>
    %3 = vector.extract_strided_slice %1 {offsets = [0, 0], sizes = [4, 1], strides = [1, 1]} : vector<4x4xf32> to vector<4x1xf32>
    %4 = vector.broadcast %3 : vector<4x1xf32> to vector<4x32xf32>
    %5 = vector.broadcast %2 : vector<1x32xf32> to vector<4x32xf32>
    %6 = arith.mulf %4, %5 : vector<4x32xf32>
    %7 = vector.extract_strided_slice %1 {offsets = [0, 1], sizes = [4, 1], strides = [1, 1]} : vector<4x4xf32> to vector<4x1xf32>
    %8 = vector.broadcast %7 : vector<4x1xf32> to vector<4x32xf32>
    %9 = vector.broadcast %2 : vector<1x32xf32> to vector<4x32xf32>
    %10 = arith.mulf %8, %9 : vector<4x32xf32>
    %11 = vector.extract_strided_slice %1 {offsets = [0, 2], sizes = [4, 1], strides = [1, 1]} : vector<4x4xf32> to vector<4x1xf32>
    %12 = vector.broadcast %11 : vector<4x1xf32> to vector<4x32xf32>
    %13 = vector.broadcast %2 : vector<1x32xf32> to vector<4x32xf32>
    %14 = arith.mulf %12, %13 : vector<4x32xf32>
    %15 = vector.extract_strided_slice %1 {offsets = [0, 3], sizes = [4, 1], strides = [1, 1]} : vector<4x4xf32> to vector<4x1xf32>
    %16 = vector.broadcast %15 : vector<4x1xf32> to vector<4x32xf32>
    %17 = vector.broadcast %2 : vector<1x32xf32> to vector<4x32xf32>
    %18 = arith.mulf %16, %17 : vector<4x32xf32>
    %19 = tpu.concatenate %6, %10, %14, %18 in 1 : vector<4x32xf32>, vector<4x32xf32>, vector<4x32xf32>, vector<4x32xf32> -> vector<4x128xf32>
    %20 = math.cos %19 : vector<4x128xf32>
    %21 = arith.truncf %20 : vector<4x128xf32> to vector<4x128xbf16>
    %c0_3 = arith.constant 0 : index
    %c0_4 = arith.constant 0 : index
    %22 = vector.load %arg3[%c0_3, %c0_4] : memref<4x128xbf16, #tpu.memory_space<vmem>>, vector<4x128xbf16>
    tpu.vector_store %arg3[%c0_3, %c0_4], %21 {strides = array<i32>} : memref<4x128xbf16, #tpu.memory_space<vmem>>, vector<4x128xbf16>,
    %23 = math.sin %19 : vector<4x128xf32>
    %24 = arith.truncf %23 : vector<4x128xf32> to vector<4x128xbf16>
    %c0_5 = arith.constant 0 : index
    %c0_6 = arith.constant 0 : index
    %25 = vector.load %arg4[%c0_5, %c0_6] : memref<4x128xbf16, #tpu.memory_space<vmem>>, vector<4x128xbf16>
    tpu.vector_store %arg4[%c0_5, %c0_6], %24 {strides = array<i32>} : memref<4x128xbf16, #tpu.memory_space<vmem>>, vector<4x128xbf16>,
    return
  }
  func.func @transform_0(%arg0: i32) -> (i32, i32) {
    %c0_i32 = arith.constant 0 : i32
    %c0_i32_0 = arith.constant 0 : i32
    return %arg0, %c0_i32 : i32, i32
  }
  func.func @transform_1(%arg0: i32) -> (i32, i32) {
    %c0_i32 = arith.constant 0 : i32
    %c0_i32_0 = arith.constant 0 : i32
    %c0_i32_1 = arith.constant 0 : i32
    return %c0_i32, %c0_i32_0 : i32, i32
  }
  func.func @transform_2(%arg0: i32) -> (i32, i32) {
    %c0_i32 = arith.constant 0 : i32
    %c0_i32_0 = arith.constant 0 : i32
    return %arg0, %c0_i32 : i32, i32
  }
  func.func @transform_3(%arg0: i32) -> (i32, i32) {
    %c0_i32 = arith.constant 0 : i32
    %c0_i32_0 = arith.constant 0 : i32
    return %arg0, %c0_i32 : i32, i32
  }
}

</mosaic_0001>

<llo_original>
// kernel: tpu_custom_call.1
$region0: #{tpu_custom_call.1}
  #allocation0 [shape = 'u32[]', space=smem, size = 0x4, offset = 0x4, fixed_abs, tag = 'smem constant byte address 0x4 - core index']
  #allocation1 [shape = 'u32[144,128]{1,0:T(1,128)}', space=vmem, size = 0x12000, scoped, tag = 'internal scratch']
  %s0 = inlined_call_operand.hbm [shape: s32[4,4], index: 0, kind: input, shape index: {}]
  %s1 = inlined_call_operand.vmem [shape: f32[1,32], index: 1, kind: input, shape index: {}]
  %s2 = inlined_call_operand.hbm [shape: bf16[4,128], index: 2, kind: output, shape index: {0}]
  %s3 = inlined_call_operand.hbm [shape: bf16[4,128], index: 3, kind: output, shape index: {1}]
  %4 = xla_tuple %s2, %s3
  %s5 = sld [smem:[#allocation0]]
  $region30: #{tpu_custom_call.1} parent=0
    _
  %s7 = ssub.s32 1, %s5
  %s8 = scalar_select 0, %s7, %s5
  $region1: #{tpu_custom_call.1} parent=0
    #allocation2 [shape = 'u8[2048]{0}', space=vmem, size = 0x800, scoped, tag = 'input window, operand 0, single buffered']
    #allocation3 [shape = 's32[1]{0}', space=sflag, size = 0x4, scoped, tag = 'scoped memory for tpu_custom_call.1']
    #allocation4 [shape = 's32[1]{0}', space=sflag, size = 0x4, scoped, tag = 'scoped memory for tpu_custom_call.1']
    #allocation5 [shape = 'u8[1024]{0}', space=vmem, size = 0x400, scoped, tag = 'output window, operand 0, single buffered']
    #allocation6 [shape = 'u8[1024]{0}', space=vmem, size = 0x400, scoped, tag = 'output window, operand 1, single buffered']
    #allocation7 [shape = 's32[1]{0}', space=sflag, size = 0x4, scoped, tag = 'scoped memory for tpu_custom_call.1']
    %9 = vsyncpa [#allocation3], 0
    %10 = vsyncpa [#allocation4], 0
    %11 = vsyncpa [#allocation7], 0
    // Predicated region
    $region2: #{tpu_custom_call.1} parent=1 // pred_check
      _
    $region3: #{tpu_custom_call.1} parent=1 // pred_check_branch
      %13 = sbr.rel (0) target = $region5
    $region4: #{tpu_custom_call.1} parent=1 // pred_region
      %s15 = ssub.s32 64, 64
      %16 = vsyncadd [#allocation3], %s15
      %s18 = sshll.u32 [#allocation2], 4
      %s19 = int_to_ptr.vmem [resolvable:$true] %s18
      %21 = dma.hbm_to_vmem [thread:$0]  %s0, 64, %s19, [#allocation3]
    $region5: #{tpu_custom_call.1} parent=1 // pred_fallthru
      _
    // Predicated region
    $region6: #{tpu_custom_call.1} parent=1 // pred_check
      _
    $region7: #{tpu_custom_call.1} parent=1 // pred_check_branch
      %23 = sbr.rel (0) target = $region9
    $region8: #{tpu_custom_call.1} parent=1 // pred_region
      _
    $region9: #{tpu_custom_call.1} parent=1 // pred_fallthru
      _
    // Predicated region
    $region10: #{tpu_custom_call.1} parent=1 // pred_check
      _
    $region11: #{tpu_custom_call.1} parent=1 // pred_check_branch
      %25 = sbr.rel (0) target = $region13
    $region12: #{tpu_custom_call.1} parent=1 // pred_region
      %26 = dma.done [#allocation3], 64
    $region13: #{tpu_custom_call.1} parent=1 // pred_fallthru
      _
    %v27 = vld [vmem:[#allocation2] sm:$0xf]
    %v28 = vcvt.s32.f32 %v27
    %v29 = vld [vmem:[%s1] sm:$0x1]
    %31 = vset.pattern.permute.xlu0 0
    %32 = vperm.xlu0 %31, %v28
    %v33 = vpop.permute.xlu0 %32
    %v36 = vlaneseq
    %v37 = vshrl.u32 %v36, 7
    %v38 = vsub.s32 0, %v37
    %v39 = vrot.slane %v29, %v38
    %v41 = vmul.f32 %v33, %v39
    %42 = vset.pattern.permute.xlu0 1
    %43 = vperm.xlu0 %42, %v28
    %v44 = vpop.permute.xlu0 %43
    %v46 = vmul.f32 %v44, %v39
    %47 = vset.pattern.permute.xlu0 2
    %48 = vperm.xlu0 %47, %v28
    %v49 = vpop.permute.xlu0 %48
    %v51 = vmul.f32 %v49, %v39
    %52 = vset.pattern.permute.xlu0 3
    %53 = vperm.xlu0 %52, %v28
    %v54 = vpop.permute.xlu0 %53
    %v56 = vmul.f32 %v54, %v39
    %58 = vrot.lane.b32.xlu0 %v46, 32
    %v59 = vpop.permute.xlu0 %58
    %62 = vrot.lane.b32.xlu0 %v51, 64
    %v63 = vpop.permute.xlu0 %62
    %66 = vrot.lane.b32.xlu0 %v56, 96
    %v67 = vpop.permute.xlu0 %66
    %vm69 = vcmask 261120
    %v70 = vsel %vm69, %v41, %v59
    %vm71 = vcmask 523264
    %v72 = vsel %vm71, %v70, %v63
    %vm73 = vcmask 785408
    %v74 = vsel %vm73, %v72, %v67
    %v75 = vand.u32 2147483647, %v74
    %vm76 = vcmp.le.f32.partialorder %v75, 0.7853982
    %vm77 = vcmp.lt.s32.totalorder %v74, 0
    %v78 = vand.u32 %v74, 2139095040
    %v79 = vshrl.u32 %v78, 23
    %v80 = vsub.s32 %v79, 127
    %v81 = vand.u32 2147483647, %v74
    %v82 = vand.u32 %v81, 8388607
    %v83 = vor.u32 %v82, 8388608
    %v84 = vsub.s32 0, %v83
    %v85 = vadd.s32 %v80, 1
    %vm86 = vcmp.gt.s32.totalorder %v85, 0
    %v87 = vsel %vm86, %v85, 0
    %v88 = vshrl.u32 %v87, 5
    %v89 = vand.u32 %v87, 31
    %v90 = vsub.s32 32, %v89
    %v91 = vshrl.u32 683565275, %v90
    %v92 = vshll.u32 683565275, %v89
    %v93 = vshrl.u32 2475754826, %v90
    %v94 = vor.u32 %v92, %v93
    %v95 = vshll.u32 2475754826, %v89
    %v96 = vshrl.u32 2131351028, %v90
    %v97 = vor.u32 %v95, %v96
    %v98 = vshll.u32 2131351028, %v89
    %v99 = vshrl.u32 2102212464, %v90
    %v100 = vor.u32 %v98, %v99
    %v101 = vshll.u32 2102212464, %v89
    %v102 = vshrl.u32 920167782, %v90
    %v103 = vor.u32 %v101, %v102
    %v104 = vshll.u32 920167782, %v89
    %v105 = vshrl.u32 1326507024, %v90
    %v106 = vor.u32 %v104, %v105
    %vm107 = vcmp.lt.s32.totalorder %v88, 1
    %vm108 = vcmp.lt.s32.totalorder %v88, 2
    %vm109 = vcmp.lt.s32.totalorder %v88, 3
    %vm110 = vcmp.lt.s32.totalorder %v88, 4
    %v111 = vsel %vm107, %v91, %v94
    %v112 = vsel %vm110, %v100, 2102212464
    %v113 = vsel %vm109, %v97, %v112
    %v114 = vsel %vm108, %v111, %v113
    %v115 = vsel %vm107, %v94, %v97
    %v116 = vsel %vm110, %v103, 920167782
    %v117 = vsel %vm109, %v100, %v116
    %v118 = vsel %vm108, %v115, %v117
    %v119 = vsel %vm107, %v97, %v100
    %v120 = vsel %vm110, %v106, 1326507024
    %v121 = vsel %vm109, %v103, %v120
    %v122 = vsel %vm108, %v119, %v121
    %v123 = vshll.u32 %v83, 8
    %v124 = vmul.u32.u64.compose %v123, %v122
    %v125 = vextract.low.u32 %v124
    %v126 = vextract.high.u32 %v124
    %v127 = vmul.u32.u64.compose %v123, %v118
    %v128 = vextract.low.u32 %v127
    %v129 = vextract.high.u32 %v127
    %v130 = vmul.u32 %v123, %v114
    %v131 = vadd.s32 %v126, %v128
    %vm132 = vc.u32 %v126, %v128
    %v133 = vadd.s32 %v129, 1
    %v134 = vsel %vm132, %v133, %v129
    %v135 = vadd.s32 %v130, %v134
    %v136 = vadd.s32 %v135, 536870912
    %v137 = vshrl.u32 %v136, 30
    %v138 = vshll.u32 %v137, 30
    %v139 = vsub.s32 %v135, %v138
    %vm140 = vcmp.lt.s32.totalorder %v139, 0
    %v141 = vsub.s32 0, %v139
    %v142 = vsel %vm140, %v141, %v139
    %v143 = vclz %v142
    %v144 = vsub.s32 %v143, 2
    %vm145 = vcmp.gt.s32.totalorder 0, %v144
    %v146 = vsel %vm145, 0, %v144
    %v147 = vsub.s32 32, %v146
    %v148 = vshll.u32 %v139, %v146
    %v149 = vshrl.u32 %v131, %v147
    %v150 = vor.u32 %v148, %v149
    %v151 = vsub.s32 4294967266, %v146
    %v152 = vadd.s32 %v151, 127
    %v153 = vshll.u32 %v152, 23
    %v154 = vor.u32 4788187, %v153
    %v155 = vand.u32 2147483647, %v154
    %v157 = vcvt.s32.f32 %v150
    %v158 = vmul.f32 %v157, %v155
    %v159 = vxor.u32 %v158, 2147483648
    %v160 = vsel %vm77, %v159, %v158
    %v161 = vsub.s32 4, %v137
    %v162 = vsel %vm77, %v161, %v137
    %v163 = vsel %vm76, %v74, %v160
    %v164 = vsel %vm76, 0, %v162
    %v165 = vcosq.f32.pop %v163
    %v166 = vsinq.f32.pop %v163
    %vm167 = vweird.f32 %v74
    %v168 = vand.u32 %v164, 3
    %vm169 = vcmp.lt.s32.totalorder %v168, 2
    %vm170 = vcmp.eq.s32.totalorder %v168, 0
    %v171 = vxor.u32 %v166, 2147483648
    %v172 = vsel %vm170, %v165, %v171
    %vm173 = vcmp.eq.s32.totalorder %v168, 2
    %v174 = vxor.u32 %v165, 2147483648
    %v175 = vsel %vm173, %v174, %v166
    %v176 = vsel %vm169, %v172, %v175
    %v177 = vsel %vm167, nan, %v176
    %v178 = vpack.c.bf16 %v177, %v177
    %179 = vst [vmem:[#allocation5] sm:$0x3] %v178
    %v180 = vand.u32 2147483647, %v74
    %vm181 = vcmp.le.f32.partialorder %v180, 0.7853982
    %vm182 = vcmp.lt.s32.totalorder %v74, 0
    %v183 = vand.u32 %v74, 2139095040
    %v184 = vshrl.u32 %v183, 23
    %v185 = vsub.s32 %v184, 127
    %v186 = vand.u32 2147483647, %v74
    %v187 = vand.u32 %v186, 8388607
    %v188 = vor.u32 %v187, 8388608
    %v189 = vsub.s32 0, %v188
    %v190 = vadd.s32 %v185, 1
    %vm191 = vcmp.gt.s32.totalorder %v190, 0
    %v192 = vsel %vm191, %v190, 0
    %v193 = vshrl.u32 %v192, 5
    %v194 = vand.u32 %v192, 31
    %v195 = vsub.s32 32, %v194
    %v196 = vshrl.u32 683565275, %v195
    %v197 = vshll.u32 683565275, %v194
    %v198 = vshrl.u32 2475754826, %v195
    %v199 = vor.u32 %v197, %v198
    %v200 = vshll.u32 2475754826, %v194
    %v201 = vshrl.u32 2131351028, %v195
    %v202 = vor.u32 %v200, %v201
    %v203 = vshll.u32 2131351028, %v194
    %v204 = vshrl.u32 2102212464, %v195
    %v205 = vor.u32 %v203, %v204
    %v206 = vshll.u32 2102212464, %v194
    %v207 = vshrl.u32 920167782, %v195
    %v208 = vor.u32 %v206, %v207
    %v209 = vshll.u32 920167782, %v194
    %v210 = vshrl.u32 1326507024, %v195
    %v211 = vor.u32 %v209, %v210
    %vm212 = vcmp.lt.s32.totalorder %v193, 1
    %vm213 = vcmp.lt.s32.totalorder %v193, 2
    %vm214 = vcmp.lt.s32.totalorder %v193, 3
    %vm215 = vcmp.lt.s32.totalorder %v193, 4
    %v216 = vsel %vm212, %v196, %v199
    %v217 = vsel %vm215, %v205, 2102212464
    %v218 = vsel %vm214, %v202, %v217
    %v219 = vsel %vm213, %v216, %v218
    %v220 = vsel %vm212, %v199, %v202
    %v221 = vsel %vm215, %v208, 920167782
    %v222 = vsel %vm214, %v205, %v221
    %v223 = vsel %vm213, %v220, %v222
    %v224 = vsel %vm212, %v202, %v205
    %v225 = vsel %vm215, %v211, 1326507024
    %v226 = vsel %vm214, %v208, %v225
    %v227 = vsel %vm213, %v224, %v226
    %v228 = vshll.u32 %v188, 8
    %v229 = vmul.u32.u64.compose %v228, %v227
    %v230 = vextract.low.u32 %v229
    %v231 = vextract.high.u32 %v229
    %v232 = vmul.u32.u64.compose %v228, %v223
    %v233 = vextract.low.u32 %v232
    %v234 = vextract.high.u32 %v232
    %v235 = vmul.u32 %v228, %v219
    %v236 = vadd.s32 %v231, %v233
    %vm237 = vc.u32 %v231, %v233
    %v238 = vadd.s32 %v234, 1
    %v239 = vsel %vm237, %v238, %v234
    %v240 = vadd.s32 %v235, %v239
    %v241 = vadd.s32 %v240, 536870912
    %v242 = vshrl.u32 %v241, 30
    %v243 = vshll.u32 %v242, 30
    %v244 = vsub.s32 %v240, %v243
    %vm245 = vcmp.lt.s32.totalorder %v244, 0
    %v246 = vsub.s32 0, %v244
    %v247 = vsel %vm245, %v246, %v244
    %v248 = vclz %v247
    %v249 = vsub.s32 %v248, 2
    %vm250 = vcmp.gt.s32.totalorder 0, %v249
    %v251 = vsel %vm250, 0, %v249
    %v252 = vsub.s32 32, %v251
    %v253 = vshll.u32 %v244, %v251
    %v254 = vshrl.u32 %v236, %v252
    %v255 = vor.u32 %v253, %v254
    %v256 = vsub.s32 4294967266, %v251
    %v257 = vadd.s32 %v256, 127
    %v258 = vshll.u32 %v257, 23
    %v259 = vor.u32 4788187, %v258
    %v260 = vand.u32 2147483647, %v259
    %v262 = vcvt.s32.f32 %v255
    %v263 = vmul.f32 %v262, %v260
    %v264 = vxor.u32 %v263, 2147483648
    %v265 = vsel %vm182, %v264, %v263
    %v266 = vsub.s32 4, %v242
    %v267 = vsel %vm182, %v266, %v242
    %v268 = vsel %vm181, %v74, %v265
    %v269 = vsel %vm181, 0, %v267
    %v270 = vcosq.f32.pop %v268
    %v271 = vsinq.f32.pop %v268
    %vm272 = vweird.f32 %v74
    %v273 = vadd.s32 %v269, 3
    %v274 = vand.u32 %v273, 3
    %vm275 = vcmp.lt.s32.totalorder %v274, 2
    %vm276 = vcmp.eq.s32.totalorder %v274, 0
    %v277 = vxor.u32 %v271, 2147483648
    %v278 = vsel %vm276, %v270, %v277
    %vm279 = vcmp.eq.s32.totalorder %v274, 2
    %v280 = vxor.u32 %v270, 2147483648
    %v281 = vsel %vm279, %v280, %v271
    %v282 = vsel %vm275, %v278, %v281
    %v283 = vsel %vm272, nan, %v282
    %v284 = vpack.c.bf16 %v283, %v283
    %285 = vst [vmem:[#allocation6] sm:$0x3] %v284
    // Predicated region
    $region14: #{tpu_custom_call.1} parent=1 // pred_check
      _
    $region15: #{tpu_custom_call.1} parent=1 // pred_check_branch
      %287 = sbr.rel (0) target = $region17
    $region16: #{tpu_custom_call.1} parent=1 // pred_region
      %s289 = ssub.s32 32, 32
      %290 = vsyncadd [#allocation4], %s289
      %s292 = sshll.u32 [#allocation5], 4
      %s293 = int_to_ptr.vmem [resolvable:$true] %s292
      %295 = dma.vmem_to_hbm [thread:$0]  %s293, 32, %s2, [#allocation4]
    $region17: #{tpu_custom_call.1} parent=1 // pred_fallthru
      _
    // Predicated region
    $region18: #{tpu_custom_call.1} parent=1 // pred_check
      _
    $region19: #{tpu_custom_call.1} parent=1 // pred_check_branch
      %297 = sbr.rel (0) target = $region21
    $region20: #{tpu_custom_call.1} parent=1 // pred_region
      %s299 = ssub.s32 32, 32
      %300 = vsyncadd [#allocation7], %s299
      %s302 = sshll.u32 [#allocation6], 4
      %s303 = int_to_ptr.vmem [resolvable:$true] %s302
      %305 = dma.vmem_to_hbm [thread:$0]  %s303, 32, %s3, [#allocation7]
    $region21: #{tpu_custom_call.1} parent=1 // pred_fallthru
      _
    // Predicated region
    $region22: #{tpu_custom_call.1} parent=1 // pred_check
      _
    $region23: #{tpu_custom_call.1} parent=1 // pred_check_branch
      %307 = sbr.rel (0) target = $region25
    $region24: #{tpu_custom_call.1} parent=1 // pred_region
      %308 = dma.done [#allocation4], 32
    $region25: #{tpu_custom_call.1} parent=1 // pred_fallthru
      _
    // Predicated region
    $region26: #{tpu_custom_call.1} parent=1 // pred_check
      _
    $region27: #{tpu_custom_call.1} parent=1 // pred_check_branch
      %310 = sbr.rel (0) target = $region29
    $region28: #{tpu_custom_call.1} parent=1 // pred_region
      %311 = dma.done [#allocation7], 32
    $region29: #{tpu_custom_call.1} parent=1 // pred_fallthru
      _
    %312 = vsyncpa [#allocation3], 1
    %313 = vsyncpa [#allocation4], 1
    %314 = vsyncpa [#allocation7], 1

</llo_original>
